<compile_context>
chip_gen: v7x
topology: tpu7x:2x2x1
jax: 0.10.0
libtpu: 0.0.40
codegen_flags: <defaults>
</compile_context>

<pallas_src>
import functools
import math

import jax
import jax.numpy as jnp
from jax.experimental import pallas as pl
from jax.experimental.pallas import tpu as pltpu


def _size_predict_kernel(x_ref, w2_ref, b2_ref, w1_ref, b1_ref, w0_ref, b0_ref,
                         o_ref):
    """Fused 3-layer MLP: Linear->ReLU->Linear->ReLU->Linear->sigmoid.

    All intermediates are lane-dense (batch on the 128-lane axis):
      x (tb, D) -> h2 (D/4, tb) -> h1 (D/16, tb) -> y (1, tb).
    Weights are in native PyTorch (out, in) layout; biases are (out, 1).
    """
    x = x_ref[...]                                                   # (tb, D)
    # Layer 2:  W2 (d4, D) contracted with x (tb, D) over D  ->  (d4, tb).
    h = jax.lax.dot_general(
        w2_ref[...], x,
        dimension_numbers=(((1,), (1,)), ((), ())),
        preferred_element_type=jnp.float32) + b2_ref[...]            # (d4, tb)
    h = jnp.maximum(h, 0.0)
    # Layer 1:  W1 (d16, d4) @ h (d4, tb)  ->  (d16, tb).
    h = jnp.dot(w1_ref[...], h,
                preferred_element_type=jnp.float32) + b1_ref[...]    # (d16, tb)
    h = jnp.maximum(h, 0.0)
    # Layer 0:  W0 (1, d16) @ h (d16, tb)  ->  (1, tb), batch on lanes.
    y = jnp.dot(w0_ref[...], h,
                preferred_element_type=jnp.float32) + b0_ref[...]    # (1, tb)
    o_ref[...] = jax.nn.sigmoid(y).astype(o_ref.dtype)


@functools.partial(jax.jit, static_argnames=("block_b",))
def size_predict(x, w2, b2, w1, b1, w0, b0, *, block_b=8192):
    """x: (B, entity_dim).  Returns (B,) -- matches torch .squeeze().

    w2, w1, w0: native PyTorch (out, in) layout; b2, b1, b0: (out, 1) columns.
    """
    B, D = x.shape
    d4 = w2.shape[0]    # entity_dim // 4
    d16 = w1.shape[0]   # entity_dim // 16

    # Batch tile selection (no padding, ever):
    #  - single tile: block equals the full batch extent -> always legal;
    #  - multi tile:  tile is a multiple of 128 so the lane-dense (1, tb)
    #    output block satisfies the (8, 128) rule; the ragged last block is
    #    clipped by Pallas (OOB input rows garbage, OOB output cols dropped).
    if B <= block_b:
        tb = B
    else:
        tb = max(128, (block_b // 128) * 128)
    grid = (pl.cdiv(B, tb),)

    # Weights / biases: same (full) block every grid step -> resident in VMEM.
    resident = lambda shape: pl.BlockSpec(shape, lambda i: (0, 0))

    itemsize = jnp.dtype(x.dtype).itemsize
    cost = pl.CostEstimate(
        flops=2 * B * (D * d4 + d4 * d16 + d16),
        transcendentals=B,                                   # sigmoid
        bytes_accessed=B * D * itemsize + B * itemsize
        + (D * d4 + d4 + d4 * d16 + d16 + d16 + 1) * 4,
    )

    out = pl.pallas_call(
        _size_predict_kernel,
        out_shape=jax.ShapeDtypeStruct((1, B), x.dtype),
        grid_spec=pltpu.PrefetchScalarGridSpec(
            num_scalar_prefetch=0,
            grid=grid,
            in_specs=[
                pl.BlockSpec((tb, D), lambda i: (i, 0)),  # x tile (large)
                resident((d4, D)),    # W2  (native (out, in))
                resident((d4, 1)),    # b2  (column)
                resident((d16, d4)),  # W1
                resident((d16, 1)),   # b1
                resident((1, d16)),   # W0
                resident((1, 1)),     # b0
            ],
            out_specs=pl.BlockSpec((1, tb), lambda i: (0, i)),  # lane-dense row
        ),
        compiler_params=pltpu.CompilerParams(
            dimension_semantics=("parallel",),
            vmem_limit_bytes=48 * 1024 * 1024),
        cost_estimate=cost,
    )(x, w2, b2, w1, b1, w0, b0)
    # (1, B) -> (B,), like torch's .squeeze().
    return out[0]


def _xavier_uniform(key, fan_out, fan_in, dtype=jnp.float32):
    bound = math.sqrt(6.0 / (fan_in + fan_out))
    # PyTorch stores Linear weight as (out, in); sample in that shape.
    return jax.random.uniform(key, (fan_out, fan_in), dtype,
                              minval=-bound, maxval=bound)


def _linear_bias(key, fan_in, fan_out, dtype=jnp.float32):
    bound = 1.0 / math.sqrt(fan_in)
    return jax.random.uniform(key, (fan_out,), dtype,
                              minval=-bound, maxval=bound)


if __name__ == "__main__":
    entity_dim = 64   # -> hidden dims 16 and 4

    key = jax.random.PRNGKey(0)
    kw2, kb2, kw1, kb1, kw0, kb0, kx1, kx2, kx3 = jax.random.split(key, 9)

    # Deterministic parameter init mirroring the PyTorch module's __init__.
    W2 = _xavier_uniform(kw2, entity_dim // 4, entity_dim)        # (16, 64)
    b2 = _linear_bias(kb2, entity_dim, entity_dim // 4)           # (16,)
    W1 = _xavier_uniform(kw1, entity_dim // 16, entity_dim // 4)  # (4, 16)
    b1 = _linear_bias(kb1, entity_dim // 4, entity_dim // 16)     # (4,)
    W0 = _xavier_uniform(kw0, 1, entity_dim // 16)                # (1, 4)
    b0 = _linear_bias(kb0, entity_dim // 16, 1)                   # (1,)

    def reference(x):
        # Pure-JAX reference (same semantics as the PyTorch forward).
        h = jnp.maximum(x @ W2.T + b2, 0.0)
        h = jnp.maximum(h @ W1.T + b1, 0.0)
        return jnp.squeeze(jax.nn.sigmoid(h @ W0.T + b0), axis=-1)

    def run(x, **kw):
        return size_predict(
            x,
            W2, b2[:, None],
            W1, b1[:, None],
            W0, b0[:, None],
            **kw)

    # Case 1: small, non-tile-aligned batch (single full-extent block).
    x1 = jax.random.normal(kx1, (20, entity_dim), jnp.float32)
    out1 = jax.block_until_ready(run(x1))
    assert out1.shape == (20,)
    assert jnp.allclose(out1, reference(x1), atol=1e-5, rtol=1e-5)

    # Case 2: multi-tile grid with a ragged (clipped) last block, no padding.
    x2 = jax.random.normal(kx2, (300, entity_dim), jnp.float32)
    out2 = jax.block_until_ready(run(x2, block_b=128))
    assert out2.shape == (300,)
    assert jnp.allclose(out2, reference(x2), atol=1e-5, rtol=1e-5)

    # Case 3: default 8192-row tile, 2-step grid with ragged tail.
    x3 = jax.random.normal(kx3, (8500, entity_dim), jnp.float32)
    out3 = jax.block_until_ready(run(x3))
    assert out3.shape == (8500,)
    assert jnp.allclose(out3, reference(x3), atol=1e-5, rtol=1e-5)

    print("KERNEL_OK")
</pallas_src>

<mosaic_0001>
module attributes {stable_mosaic.version = 11 : i64} {
  func.func @_size_predict_kernel(%arg0: i32, %arg1: memref<20x64xf32, #tpu.memory_space<vmem>>, %arg2: memref<16x64xf32, #tpu.memory_space<vmem>>, %arg3: memref<16x1xf32, #tpu.memory_space<vmem>>, %arg4: memref<4x16xf32, #tpu.memory_space<vmem>>, %arg5: memref<4x1xf32, #tpu.memory_space<vmem>>, %arg6: memref<1x4xf32, #tpu.memory_space<vmem>>, %arg7: memref<1x1xf32, #tpu.memory_space<vmem>>, %arg8: memref<1x20xf32, #tpu.memory_space<vmem>>) attributes {dimension_semantics = [#tpu.dimension_semantics<parallel>], iteration_bounds = array<i64: 1>, scalar_prefetch = 0 : i64, scratch_operands = 0 : i64, tpu.core_type = #tpu.core_type<tc>, window_params = [{transform_indices = @transform_0, window_bounds = array<i64: 20, 64>}, {pipeline_mode = #tpu.pipeline_mode<synchronous>, transform_indices = @transform_1, window_bounds = array<i64: 16, 64>}, {pipeline_mode = #tpu.pipeline_mode<synchronous>, transform_indices = @transform_2, window_bounds = array<i64: 16, 1>}, {pipeline_mode = #tpu.pipeline_mode<synchronous>, transform_indices = @transform_3, window_bounds = array<i64: 4, 16>}, {pipeline_mode = #tpu.pipeline_mode<synchronous>, transform_indices = @transform_4, window_bounds = array<i64: 4, 1>}, {pipeline_mode = #tpu.pipeline_mode<synchronous>, transform_indices = @transform_5, window_bounds = array<i64: 1, 4>}, {pipeline_mode = #tpu.pipeline_mode<synchronous>, transform_indices = @transform_6, window_bounds = array<i64: 1, 1>}, {transform_indices = @transform_7, window_bounds = array<i64: 1, 20>}]} {
    %c0 = arith.constant 0 : index
    %c0_0 = arith.constant 0 : index
    %0 = vector.load %arg1[%c0, %c0_0] : memref<20x64xf32, #tpu.memory_space<vmem>>, vector<20x64xf32>
    %c0_1 = arith.constant 0 : index
    %c0_2 = arith.constant 0 : index
    %1 = vector.load %arg2[%c0_1, %c0_2] : memref<16x64xf32, #tpu.memory_space<vmem>>, vector<16x64xf32>
    %cst = arith.constant dense<0.000000e+00> : vector<16x20xf32>
    %2 = tpu.matmul %1, %0, %cst {dimension_numbers = #tpu.dot_dimension_numbers<[1], [1], [0], [0], [0, 0, 1, 0], [], []>} : vector<16x64xf32>, vector<20x64xf32>, vector<16x20xf32> -> vector<16x20xf32>
    %c0_3 = arith.constant 0 : index
    %c0_4 = arith.constant 0 : index
    %3 = vector.load %arg3[%c0_3, %c0_4] : memref<16x1xf32, #tpu.memory_space<vmem>>, vector<16x1xf32>
    %4 = vector.broadcast %3 : vector<16x1xf32> to vector<16x20xf32>
    %5 = arith.addf %2, %4 : vector<16x20xf32>
    %cst_5 = arith.constant 0.000000e+00 : f32
    %6 = vector.broadcast %cst_5 : f32 to vector<16x20xf32>
    %7 = arith.maximumf %5, %6 : vector<16x20xf32>
    %c0_6 = arith.constant 0 : index
    %c0_7 = arith.constant 0 : index
    %8 = vector.load %arg4[%c0_6, %c0_7] : memref<4x16xf32, #tpu.memory_space<vmem>>, vector<4x16xf32>
    %cst_8 = arith.constant dense<0.000000e+00> : vector<4x20xf32>
    %9 = tpu.matmul %8, %7, %cst_8 {dimension_numbers = #tpu.dot_dimension_numbers<[1], [0], [0], [1], [0, 0, 1, 1], [], []>} : vector<4x16xf32>, vector<16x20xf32>, vector<4x20xf32> -> vector<4x20xf32>
    %c0_9 = arith.constant 0 : index
    %c0_10 = arith.constant 0 : index
    %10 = vector.load %arg5[%c0_9, %c0_10] : memref<4x1xf32, #tpu.memory_space<vmem>>, vector<4x1xf32>
    %11 = vector.broadcast %10 : vector<4x1xf32> to vector<4x20xf32>
    %12 = arith.addf %9, %11 : vector<4x20xf32>
    %cst_11 = arith.constant 0.000000e+00 : f32
    %13 = vector.broadcast %cst_11 : f32 to vector<4x20xf32>
    %14 = arith.maximumf %12, %13 : vector<4x20xf32>
    %c0_12 = arith.constant 0 : index
    %c0_13 = arith.constant 0 : index
    %15 = vector.load %arg6[%c0_12, %c0_13] : memref<1x4xf32, #tpu.memory_space<vmem>>, vector<1x4xf32>
    %cst_14 = arith.constant dense<0.000000e+00> : vector<1x20xf32>
    %16 = tpu.matmul %15, %14, %cst_14 {dimension_numbers = #tpu.dot_dimension_numbers<[1], [0], [0], [1], [0, 0, 1, 1], [], []>} : vector<1x4xf32>, vector<4x20xf32>, vector<1x20xf32> -> vector<1x20xf32>
    %c0_15 = arith.constant 0 : index
    %c0_16 = arith.constant 0 : index
    %17 = vector.load %arg7[%c0_15, %c0_16] : memref<1x1xf32, #tpu.memory_space<vmem>>, vector<1x1xf32>
    %18 = vector.broadcast %17 : vector<1x1xf32> to vector<1x20xf32>
    %19 = arith.addf %16, %18 : vector<1x20xf32>
    %20 = arith.negf %19 : vector<1x20xf32>
    %21 = math.exp %20 : vector<1x20xf32>
    %cst_17 = arith.constant 1.000000e+00 : f32
    %22 = vector.broadcast %cst_17 : f32 to vector<1x20xf32>
    %23 = arith.addf %22, %21 : vector<1x20xf32>
    %24 = arith.divf %22, %23 : vector<1x20xf32>
    %c0_18 = arith.constant 0 : index
    %c0_19 = arith.constant 0 : index
    %25 = vector.load %arg8[%c0_18, %c0_19] : memref<1x20xf32, #tpu.memory_space<vmem>>, vector<1x20xf32>
    tpu.vector_store %arg8[%c0_18, %c0_19], %24 {strides = array<i32>} : memref<1x20xf32, #tpu.memory_space<vmem>>, vector<1x20xf32>,
    return
  }
  func.func @transform_0(%arg0: i32) -> (i32, i32) {
    %c0_i32 = arith.constant 0 : i32
    %c0_i32_0 = arith.constant 0 : i32
    return %arg0, %c0_i32 : i32, i32
  }
  func.func @transform_1(%arg0: i32) -> (i32, i32) {
    %c0_i32 = arith.constant 0 : i32
    %c0_i32_0 = arith.constant 0 : i32
    %c0_i32_1 = arith.constant 0 : i32
    return %c0_i32, %c0_i32_0 : i32, i32
  }
  func.func @transform_2(%arg0: i32) -> (i32, i32) {
    %c0_i32 = arith.constant 0 : i32
    %c0_i32_0 = arith.constant 0 : i32
    %c0_i32_1 = arith.constant 0 : i32
    return %c0_i32, %c0_i32_0 : i32, i32
  }
  func.func @transform_3(%arg0: i32) -> (i32, i32) {
    %c0_i32 = arith.constant 0 : i32
    %c0_i32_0 = arith.constant 0 : i32
    %c0_i32_1 = arith.constant 0 : i32
    return %c0_i32, %c0_i32_0 : i32, i32
  }
  func.func @transform_4(%arg0: i32) -> (i32, i32) {
    %c0_i32 = arith.constant 0 : i32
    %c0_i32_0 = arith.constant 0 : i32
    %c0_i32_1 = arith.constant 0 : i32
    return %c0_i32, %c0_i32_0 : i32, i32
  }
  func.func @transform_5(%arg0: i32) -> (i32, i32) {
    %c0_i32 = arith.constant 0 : i32
    %c0_i32_0 = arith.constant 0 : i32
    %c0_i32_1 = arith.constant 0 : i32
    return %c0_i32, %c0_i32_0 : i32, i32
  }
  func.func @transform_6(%arg0: i32) -> (i32, i32) {
    %c0_i32 = arith.constant 0 : i32
    %c0_i32_0 = arith.constant 0 : i32
    %c0_i32_1 = arith.constant 0 : i32
    return %c0_i32, %c0_i32_0 : i32, i32
  }
  func.func @transform_7(%arg0: i32) -> (i32, i32) {
    %c0_i32 = arith.constant 0 : i32
    %c0_i32_0 = arith.constant 0 : i32
    return %c0_i32, %arg0 : i32, i32
  }
}

</mosaic_0001>

<llo_original>
// kernel: size_predict.1
$region0: #{size_predict.1}
  #allocation0 [shape = 'u32[]', space=smem, size = 0x4, offset = 0x4, fixed_abs, tag = 'smem constant byte address 0x4 - core index']
  #allocation1 [shape = 'u32[144,128]{1,0:T(1,128)}', space=vmem, size = 0x12000, scoped, tag = 'internal scratch']
  #allocation2 [shape = 'f32[1,1]{1,0:T(1,128)S(1)}', space=vmem, size = 0x200, scoped, tag = 'scoped memory for size_predict.1']
  %s0 = inlined_call_operand.vmem [shape: f32[20,64], index: 0, kind: input, shape index: {}]
  %s1 = inlined_call_operand.hbm [shape: f32[16,64], index: 1, kind: input, shape index: {}]
  %s2 = inlined_call_operand.vmem [shape: f32[16,1], index: 2, kind: input, shape index: {}]
  %s3 = inlined_call_operand.vmem [shape: f32[4,16], index: 3, kind: input, shape index: {}]
  %s4 = inlined_call_operand.vmem [shape: f32[4,1], index: 4, kind: input, shape index: {}]
  %s5 = inlined_call_operand.vmem [shape: f32[1,4], index: 5, kind: input, shape index: {}]
  %s6 = inlined_call_operand.<no memory space> [shape: f32[1,1], index: 6, kind: input, shape index: {}]
  %s7 = inlined_call_operand.hbm [shape: f32[1,20], index: 7, kind: output, shape index: {}]
  %s8 = sld [smem:[#allocation0]]
  $region42: #{size_predict.1} parent=0
    _
  %s10 = ssub.s32 1, %s8
  %s11 = scalar_select 0, %s10, %s8
  %v12 = vstv %s6
  %13 = vst [vmem:[#allocation2] sm:$0x1] %v12
  $region1: #{size_predict.1} parent=0
    #allocation3 [shape = 'u8[8192]{0}', space=vmem, size = 0x2000, scoped, tag = 'input window, operand 1, single buffered']
    #allocation4 [shape = 's32[1]{0}', space=sflag, size = 0x4, scoped, tag = 'scoped memory for size_predict.1']
    #allocation5 [shape = 's32[1]{0}', space=sflag, size = 0x4, scoped, tag = 'scoped memory for size_predict.1']
    #allocation6 [shape = 'u8[512]{0}', space=vmem, size = 0x400, scoped, tag = 'output window, operand 0, single buffered']
    %14 = vsyncpa [#allocation4], 0
    %15 = vsyncpa [#allocation5], 0
    // Predicated region
    $region2: #{size_predict.1} parent=1 // pred_check
      _
    $region3: #{size_predict.1} parent=1 // pred_check_branch
      %17 = sbr.rel (0) target = $region5
    $region4: #{size_predict.1} parent=1 // pred_region
      _
    $region5: #{size_predict.1} parent=1 // pred_fallthru
      _
    // Predicated region
    $region6: #{size_predict.1} parent=1 // pred_check
      _
    $region7: #{size_predict.1} parent=1 // pred_check_branch
      %19 = sbr.rel (0) target = $region9
    $region8: #{size_predict.1} parent=1 // pred_region
      %s21 = ssub.s32 256, 256
      %22 = vsyncadd [#allocation4], %s21
      %s23 = sshll.u32 [#allocation3], 4
      %s24 = int_to_ptr.vmem [resolvable:$true] %s23
      %29 = dma.hbm_to_vmem [thread:$0]  %s1, 256, %s24, [#allocation4], 128, 128, 8
    $region9: #{size_predict.1} parent=1 // pred_fallthru
      _
    // Predicated region
    $region10: #{size_predict.1} parent=1 // pred_check
      _
    $region11: #{size_predict.1} parent=1 // pred_check_branch
      %31 = sbr.rel (0) target = $region13
    $region12: #{size_predict.1} parent=1 // pred_region
      _
    $region13: #{size_predict.1} parent=1 // pred_fallthru
      _
    // Predicated region
    $region14: #{size_predict.1} parent=1 // pred_check
      _
    $region15: #{size_predict.1} parent=1 // pred_check_branch
      %33 = sbr.rel (0) target = $region17
    $region16: #{size_predict.1} parent=1 // pred_region
      _
    $region17: #{size_predict.1} parent=1 // pred_fallthru
      _
    // Predicated region
    $region18: #{size_predict.1} parent=1 // pred_check
      _
    $region19: #{size_predict.1} parent=1 // pred_check_branch
      %35 = sbr.rel (0) target = $region21
    $region20: #{size_predict.1} parent=1 // pred_region
      _
    $region21: #{size_predict.1} parent=1 // pred_fallthru
      _
    // Predicated region
    $region22: #{size_predict.1} parent=1 // pred_check
      _
    $region23: #{size_predict.1} parent=1 // pred_check_branch
      %37 = sbr.rel (0) target = $region25
    $region24: #{size_predict.1} parent=1 // pred_region
      _
    $region25: #{size_predict.1} parent=1 // pred_fallthru
      _
    // Predicated region
    $region26: #{size_predict.1} parent=1 // pred_check
      _
    $region27: #{size_predict.1} parent=1 // pred_check_branch
      %39 = sbr.rel (0) target = $region29
    $region28: #{size_predict.1} parent=1 // pred_region
      _
    $region29: #{size_predict.1} parent=1 // pred_fallthru
      _
    // Predicated region
    $region30: #{size_predict.1} parent=1 // pred_check
      _
    $region31: #{size_predict.1} parent=1 // pred_check_branch
      %41 = sbr.rel (0) target = $region33
    $region32: #{size_predict.1} parent=1 // pred_region
      %42 = dma.done [#allocation4], 256
    $region33: #{size_predict.1} parent=1 // pred_fallthru
      _
    %v43 = vld [vmem:[%s0] sm:$0xff]
    %v44 = vld [vmem:[%s0 + $0x8] sm:$0xff]
    %v45 = vld [vmem:[%s0 + $0x10] sm:$0xf]
    %v46 = vld [vmem:[#allocation3] sm:$0xff]
    %v47 = vld [vmem:[#allocation3 + $0x8] sm:$0xff]
    %v48 = vld [vmem:[%s2] sm:$0xff]
    %v49 = vld [vmem:[%s2 + $0x8] sm:$0xff]
    %51 = vset.pattern.permute.xlu0 0
    %52 = vperm.xlu0 %51, %v48
    %v53 = vpop.permute.xlu0 %52
    %56 = vset.pattern.permute.xlu0 0
    %57 = vperm.xlu0 %56, %v49
    %v58 = vpop.permute.xlu0 %57
    %vm60 = vcmask 523264
    %v62 = vsel %vm60, %v46, 0
    %v65 = vsel %vm60, %v47, 0
    %v68 = vsel %vm60, %v43, 0
    %v71 = vsel %vm60, %v44, 0
    %v74 = vsel %vm60, %v45, 0
    %76 = vmatprep.subr.mxu0 0.0
    %77 = vmatpush1.xpose.msra.mxu0 %v68
    %78 = vmatprep.subr.mxu0 0.0
    %79 = vmatpush1.xpose.msra.mxu0 %v71
    %80 = vmatprep.subr.mxu0 0.0
    %81 = vmatpush1.xpose.msra.mxu0 %v74
    %82 = vmatprep.subr.mxu0 0.0
    %83 = vmatpush1.xpose.msra.mxu0 0.0
    %84 = vmatprep.subr.mxu0 0.0
    %85 = vmatpush1.xpose.msra.mxu0 0.0
    %86 = vmatprep.subr.mxu0 0.0
    %87 = vmatpush1.xpose.msra.mxu0 0.0
    %88 = vmatprep.subr.mxu0 0.0
    %89 = vmatpush1.xpose.msra.mxu0 0.0
    %90 = vmatprep.subr.mxu0 0.0
    %91 = vmatpush1.xpose.msra.mxu0 0.0
    %92 = vmatprep.subr.mxu0 0.0
    %93 = vmatpush1.xpose.msra.mxu0 0.0
    %94 = vmatprep.subr.mxu0 0.0
    %95 = vmatpush1.xpose.msra.mxu0 0.0
    %96 = vmatprep.subr.mxu0 0.0
    %97 = vmatpush1.xpose.msra.mxu0 0.0
    %98 = vmatprep.subr.mxu0 0.0
    %99 = vmatpush1.xpose.msra.mxu0 0.0
    %100 = vmatprep.subr.mxu0 0.0
    %101 = vmatpush1.xpose.msra.mxu0 0.0
    %102 = vmatprep.subr.mxu0 0.0
    %103 = vmatpush1.xpose.msra.mxu0 0.0
    %104 = vmatprep.subr.mxu0 0.0
    %105 = vmatpush1.xpose.msra.mxu0 0.0
    %106 = vmatprep.subr.mxu0 0.0
    %107 = vmatpush1.xpose.msra.mxu0 0.0
    %108 = vmatprep.subr.mxu0 0.0
    %109 = vmatpush1.xpose.msra.mxu0 0.0
    %110 = vmatprep.subr.mxu0 0.0
    %111 = vmatpush1.xpose.msra.mxu0 0.0
    %112 = vmatprep.subr.mxu0 0.0
    %113 = vmatpush1.xpose.msra.mxu0 0.0
    %114 = vmatprep.subr.mxu0 0.0
    %115 = vmatpush1.xpose.msra.mxu0 0.0
    %116 = vmatprep.subr.mxu0 0.0
    %117 = vmatpush1.xpose.msra.mxu0 0.0
    %118 = vmatprep.subr.mxu0 0.0
    %119 = vmatpush1.xpose.msra.mxu0 0.0
    %120 = vmatprep.subr.mxu0 0.0
    %121 = vmatpush1.xpose.msra.mxu0 0.0
    %122 = vmatprep.subr.mxu0 0.0
    %123 = vmatpush1.xpose.msra.mxu0 0.0
    %124 = vmatprep.subr.mxu0 0.0
    %125 = vmatpush1.xpose.msra.mxu0 0.0
    %126 = vmatprep.subr.mxu0 0.0
    %127 = vmatpush1.xpose.msra.mxu0 0.0
    %128 = vmatprep.subr.mxu0 0.0
    %129 = vmatpush1.xpose.msra.mxu0 0.0
    %130 = vmatprep.subr.mxu0 0.0
    %131 = vmatpush1.xpose.msra.mxu0 0.0
    %132 = vmatprep.subr.mxu0 0.0
    %133 = vmatpush1.xpose.msra.mxu0 0.0
    %134 = vmatprep.subr.mxu0 0.0
    %135 = vmatpush1.xpose.msra.mxu0 0.0
    %136 = vmatprep.subr.mxu0 0.0
    %137 = vmatpush1.xpose.msra.mxu0 0.0
    %138 = vmatprep.subr.mxu0 0.0
    %139 = vmatpush1.xpose.msra.mxu0 0.0
    %140 = vmatprep.mubr.f32.mxu0 0.0
    %141 = vmatmul.mubr.f32.gmra.mrb[0].mxu0 %v62
    %v142 = vpop.f32.mrb[0].mxu0
    %v143 = vadd.f32 %v53, %v142
    %v144 = vpop.f32.mrb[0].mxu0
    %145 = vmatprep.mubr.f32.mxu0 0.0
    %146 = vmatmul.mubr.f32.gmra.mrb[0].mxu0 %v65
    %v147 = vpop.f32.mrb[0].mxu0
    %v148 = vadd.f32 %v58, %v147
    %v149 = vpop.f32.mrb[0].mxu0
    %150 = vdwg.mxu0
    %v151 = vmax.f32 %v143, 0.0
    %v152 = vmax.f32 %v148, 0.0
    %v153 = vld [vmem:[%s3] sm:$0xf]
    %v154 = vld [vmem:[%s4] sm:$0xf]
    %156 = vset.pattern.permute.xlu0 0
    %157 = vperm.xlu0 %156, %v154
    %v158 = vpop.permute.xlu0 %157
    %vm160 = vcmask 130048
    %v162 = vsel %vm160, %v153, 0
    %164 = vmatprep.subr.mxu0 0.0
    %165 = vmatpush1.msra.mxu0 %v151
    %166 = vmatprep.subr.mxu0 0.0
    %167 = vmatpush1.msra.mxu0 %v152
    %168 = vmatprep.subr.mxu0 0.0
    %169 = vmatpush1.msra.mxu0 0.0
    %170 = vmatprep.subr.mxu0 0.0
    %171 = vmatpush1.msra.mxu0 0.0
    %172 = vmatprep.subr.mxu0 0.0
    %173 = vmatpush1.msra.mxu0 0.0
    %174 = vmatprep.subr.mxu0 0.0
    %175 = vmatpush1.msra.mxu0 0.0
    %176 = vmatprep.subr.mxu0 0.0
    %177 = vmatpush1.msra.mxu0 0.0
    %178 = vmatprep.subr.mxu0 0.0
    %179 = vmatpush1.msra.mxu0 0.0
    %180 = vmatprep.subr.mxu0 0.0
    %181 = vmatpush1.msra.mxu0 0.0
    %182 = vmatprep.subr.mxu0 0.0
    %183 = vmatpush1.msra.mxu0 0.0
    %184 = vmatprep.subr.mxu0 0.0
    %185 = vmatpush1.msra.mxu0 0.0
    %186 = vmatprep.subr.mxu0 0.0
    %187 = vmatpush1.msra.mxu0 0.0
    %188 = vmatprep.subr.mxu0 0.0
    %189 = vmatpush1.msra.mxu0 0.0
    %190 = vmatprep.subr.mxu0 0.0
    %191 = vmatpush1.msra.mxu0 0.0
    %192 = vmatprep.subr.mxu0 0.0
    %193 = vmatpush1.msra.mxu0 0.0
    %194 = vmatprep.subr.mxu0 0.0
    %195 = vmatpush1.msra.mxu0 0.0
    %196 = vmatprep.subr.mxu0 0.0
    %197 = vmatpush1.msra.mxu0 0.0
    %198 = vmatprep.subr.mxu0 0.0
    %199 = vmatpush1.msra.mxu0 0.0
    %200 = vmatprep.subr.mxu0 0.0
    %201 = vmatpush1.msra.mxu0 0.0
    %202 = vmatprep.subr.mxu0 0.0
    %203 = vmatpush1.msra.mxu0 0.0
    %204 = vmatprep.subr.mxu0 0.0
    %205 = vmatpush1.msra.mxu0 0.0
    %206 = vmatprep.subr.mxu0 0.0
    %207 = vmatpush1.msra.mxu0 0.0
    %208 = vmatprep.subr.mxu0 0.0
    %209 = vmatpush1.msra.mxu0 0.0
    %210 = vmatprep.subr.mxu0 0.0
    %211 = vmatpush1.msra.mxu0 0.0
    %212 = vmatprep.subr.mxu0 0.0
    %213 = vmatpush1.msra.mxu0 0.0
    %214 = vmatprep.subr.mxu0 0.0
    %215 = vmatpush1.msra.mxu0 0.0
    %216 = vmatprep.subr.mxu0 0.0
    %217 = vmatpush1.msra.mxu0 0.0
    %218 = vmatprep.subr.mxu0 0.0
    %219 = vmatpush1.msra.mxu0 0.0
    %220 = vmatprep.subr.mxu0 0.0
    %221 = vmatpush1.msra.mxu0 0.0
    %222 = vmatprep.subr.mxu0 0.0
    %223 = vmatpush1.msra.mxu0 0.0
    %224 = vmatprep.subr.mxu0 0.0
    %225 = vmatpush1.msra.mxu0 0.0
    %226 = vmatprep.subr.mxu0 0.0
    %227 = vmatpush1.msra.mxu0 0.0
    %228 = vmatprep.mubr.f32.mxu0 0.0
    %229 = vmatmul.mubr.f32.gmra.mrb[0].mxu0 %v162
    %v230 = vpop.f32.mrb[0].mxu0
    %v231 = vadd.f32 %v158, %v230
    %v232 = vpop.f32.mrb[0].mxu0
    %233 = vdwg.mxu0
    %v234 = vmax.f32 %v231, 0.0
    %v235 = vld [vmem:[%s5] sm:$0x1]
    %v236 = vld [vmem:[#allocation2] sm:$0x1]
    %238 = vset.pattern.permute.xlu0 0
    %239 = vperm.xlu0 %238, %v236
    %v240 = vpop.permute.xlu0 %239
    %v242 = vlaneseq
    %v243 = vshrl.u32 %v242, 7
    %v244 = vsub.s32 0, %v243
    %v245 = vrot.slane %v240, %v244
    %vm246 = vcmask 31744
    %v248 = vsel %vm246, %v235, 0
    %vm250 = vcmask 1043456
    %v252 = vsel %vm250, %v234, 0
    %254 = vmatprep.subr.mxu0 0.0
    %255 = vmatpush1.msra.mxu0 %v252
    %256 = vmatprep.subr.mxu0 0.0
    %257 = vmatpush1.msra.mxu0 0.0
    %258 = vmatprep.subr.mxu0 0.0
    %259 = vmatpush1.msra.mxu0 0.0
    %260 = vmatprep.subr.mxu0 0.0
    %261 = vmatpush1.msra.mxu0 0.0
    %262 = vmatprep.subr.mxu0 0.0
    %263 = vmatpush1.msra.mxu0 0.0
    %264 = vmatprep.subr.mxu0 0.0
    %265 = vmatpush1.msra.mxu0 0.0
    %266 = vmatprep.subr.mxu0 0.0
    %267 = vmatpush1.msra.mxu0 0.0
    %268 = vmatprep.subr.mxu0 0.0
    %269 = vmatpush1.msra.mxu0 0.0
    %270 = vmatprep.subr.mxu0 0.0
    %271 = vmatpush1.msra.mxu0 0.0
    %272 = vmatprep.subr.mxu0 0.0
    %273 = vmatpush1.msra.mxu0 0.0
    %274 = vmatprep.subr.mxu0 0.0
    %275 = vmatpush1.msra.mxu0 0.0
    %276 = vmatprep.subr.mxu0 0.0
    %277 = vmatpush1.msra.mxu0 0.0
    %278 = vmatprep.subr.mxu0 0.0
    %279 = vmatpush1.msra.mxu0 0.0
    %280 = vmatprep.subr.mxu0 0.0
    %281 = vmatpush1.msra.mxu0 0.0
    %282 = vmatprep.subr.mxu0 0.0
    %283 = vmatpush1.msra.mxu0 0.0
    %284 = vmatprep.subr.mxu0 0.0
    %285 = vmatpush1.msra.mxu0 0.0
    %286 = vmatprep.subr.mxu0 0.0
    %287 = vmatpush1.msra.mxu0 0.0
    %288 = vmatprep.subr.mxu0 0.0
    %289 = vmatpush1.msra.mxu0 0.0
    %290 = vmatprep.subr.mxu0 0.0
    %291 = vmatpush1.msra.mxu0 0.0
    %292 = vmatprep.subr.mxu0 0.0
    %293 = vmatpush1.msra.mxu0 0.0
    %294 = vmatprep.subr.mxu0 0.0
    %295 = vmatpush1.msra.mxu0 0.0
    %296 = vmatprep.subr.mxu0 0.0
    %297 = vmatpush1.msra.mxu0 0.0
    %298 = vmatprep.subr.mxu0 0.0
    %299 = vmatpush1.msra.mxu0 0.0
    %300 = vmatprep.subr.mxu0 0.0
    %301 = vmatpush1.msra.mxu0 0.0
    %302 = vmatprep.subr.mxu0 0.0
    %303 = vmatpush1.msra.mxu0 0.0
    %304 = vmatprep.subr.mxu0 0.0
    %305 = vmatpush1.msra.mxu0 0.0
    %306 = vmatprep.subr.mxu0 0.0
    %307 = vmatpush1.msra.mxu0 0.0
    %308 = vmatprep.subr.mxu0 0.0
    %309 = vmatpush1.msra.mxu0 0.0
    %310 = vmatprep.subr.mxu0 0.0
    %311 = vmatpush1.msra.mxu0 0.0
    %312 = vmatprep.subr.mxu0 0.0
    %313 = vmatpush1.msra.mxu0 0.0
    %314 = vmatprep.subr.mxu0 0.0
    %315 = vmatpush1.msra.mxu0 0.0
    %316 = vmatprep.subr.mxu0 0.0
    %317 = vmatpush1.msra.mxu0 0.0
    %318 = vmatprep.mubr.f32.mxu0 0.0
    %319 = vmatmul.mubr.f32.gmra.mrb[0].mxu0 %v248
    %v320 = vpop.f32.mrb[0].mxu0
    %v321 = vadd.f32 %v245, %v320
    %v322 = vpop.f32.mrb[0].mxu0
    %323 = vdwg.mxu0
    %v324 = vxor.u32 %v321, 2147483648
    %v325 = vmul.f32 %v324, 1.442695
    %v326 = vpow.pop %v325
    %v327 = vadd.f32 %v326, 1.0
    %v328 = vrcp.pop %v327
    %v329 = vmul.f32 1.0, %v328
    %vm330 = vcmask 155648
    %331 = vst.msk [vmem:[#allocation6] sm:$0x1] %vm330, %v329
    // Predicated region
    $region34: #{size_predict.1} parent=1 // pred_check
      _
    $region35: #{size_predict.1} parent=1 // pred_check_branch
      %333 = sbr.rel (0) target = $region37
    $region36: #{size_predict.1} parent=1 // pred_region
      %s335 = ssub.s32 16, 16
      %336 = vsyncadd [#allocation5], %s335
      %s338 = sshll.u32 [#allocation6], 4
      %s339 = int_to_ptr.vmem [resolvable:$true] %s338
      %341 = dma.vmem_to_hbm [thread:$0]  %s339, 16, %s7, [#allocation5]
    $region37: #{size_predict.1} parent=1 // pred_fallthru
      _
    // Predicated region
    $region38: #{size_predict.1} parent=1 // pred_check
      _
    $region39: #{size_predict.1} parent=1 // pred_check_branch
      %343 = sbr.rel (0) target = $region41
    $region40: #{size_predict.1} parent=1 // pred_region
      %344 = dma.done [#allocation5], 16
    $region41: #{size_predict.1} parent=1 // pred_fallthru
      _
    %345 = vsyncpa [#allocation4], 1
    %346 = vsyncpa [#allocation5], 1

</llo_original>
